<compile_context>
chip_gen: v7x
topology: tpu7x:2x2x1
jax: 0.10.0
libtpu: 0.0.40
codegen_flags: <defaults>
</compile_context>

<pallas_src>
from functools import partial

import numpy as np
import jax
import jax.numpy as jnp
from jax import lax
from jax.experimental import pallas as pl
from jax.experimental.pallas import tpu as pltpu


_ROW_TILE = 512  # row-tile size for the N-tiled kernels (multiple of 8 sublanes)


def _round_up(n, m):
    return ((n + m - 1) // m) * m


def _pad_rows(x, n_pad):
    n = x.shape[0]
    if n_pad == n:
        return x
    return jnp.pad(x, ((0, n_pad - n), (0, 0)))


# ----------------------------------------------------------------------------
# layernorm: per-row mean/var over hidden_dim, row-tiled grid
# ----------------------------------------------------------------------------
def _layernorm_kernel(x_ref, w_ref, b_ref, o_ref, *, eps):
    x = x_ref[...].astype(jnp.float32)
    mean = jnp.mean(x, axis=-1, keepdims=True)
    xc = x - mean
    var = jnp.mean(xc * xc, axis=-1, keepdims=True)
    inv_std = lax.rsqrt(var + eps)                      # EUP, per-row
    o_ref[...] = (xc * inv_std * w_ref[...] + b_ref[...]).astype(o_ref.dtype)


def layernorm_pallas(x, weight, bias, eps=1e-5):
    N, D = x.shape
    tile = min(_ROW_TILE, _round_up(N, 8))
    n_pad = _round_up(N, tile)
    xp = _pad_rows(x, n_pad)
    w = weight.reshape(1, D).astype(jnp.float32)
    b = bias.reshape(1, D).astype(jnp.float32)

    out = pl.pallas_call(
        partial(_layernorm_kernel, eps=eps),
        out_shape=jax.ShapeDtypeStruct((n_pad, D), x.dtype),
        grid=(n_pad // tile,),
        in_specs=[
            pl.BlockSpec((tile, D), lambda i: (i, 0)),
            pl.BlockSpec((1, D), lambda i: (0, 0)),
            pl.BlockSpec((1, D), lambda i: (0, 0)),
        ],
        out_specs=pl.BlockSpec((tile, D), lambda i: (i, 0)),
        compiler_params=pltpu.CompilerParams(dimension_semantics=("parallel",)),
    )(xp, w, b)
    return out[:N] if n_pad != N else out


# ----------------------------------------------------------------------------
# batchnorm (BatchNorm1d, training-mode batch statistics), two-phase tiled
# TODO(synk): running_mean / running_var updates (eval-mode BatchNorm) are not
#             implemented; this reproduces the training-mode forward only.
# ----------------------------------------------------------------------------
def _bn_stats_kernel(x_ref, mean_ref, invstd_ref, *, n_rows, eps):
    i = pl.program_id(0)

    @pl.when(i == 0)
    def _init():
        mean_ref[...] = jnp.zeros_like(mean_ref)
        invstd_ref[...] = jnp.zeros_like(invstd_ref)

    x = x_ref[...].astype(jnp.float32)
    mean_ref[...] += jnp.sum(x, axis=0, keepdims=True)        # running sum(x)
    invstd_ref[...] += jnp.sum(x * x, axis=0, keepdims=True)  # running sum(x^2)

    @pl.when(i == pl.num_programs(0) - 1)
    def _finalize():
        inv_n = 1.0 / n_rows
        m = mean_ref[...] * inv_n
        var = invstd_ref[...] * inv_n - m * m                 # biased variance
        mean_ref[...] = m
        invstd_ref[...] = lax.rsqrt(var + eps)


def _scale_shift_kernel(x_ref, scale_ref, shift_ref, o_ref):
    o_ref[...] = (x_ref[...].astype(jnp.float32) * scale_ref[...]
                  + shift_ref[...]).astype(o_ref.dtype)


def batchnorm_pallas(x, weight, bias, eps=1e-5):
    N, D = x.shape
    tile = min(_ROW_TILE, _round_up(N, 8))
    n_pad = _round_up(N, tile)
    xp = _pad_rows(x, n_pad)  # zero rows contribute 0 to sum / sumsq

    # phase 1: per-feature batch statistics (reduction axis -> "arbitrary")
    mean, inv_std = pl.pallas_call(
        partial(_bn_stats_kernel, n_rows=float(N), eps=eps),
        out_shape=(jax.ShapeDtypeStruct((1, D), jnp.float32),
                   jax.ShapeDtypeStruct((1, D), jnp.float32)),
        grid=(n_pad // tile,),
        in_specs=[pl.BlockSpec((tile, D), lambda i: (i, 0))],
        out_specs=(pl.BlockSpec((1, D), lambda i: (0, 0)),
                   pl.BlockSpec((1, D), lambda i: (0, 0))),
        compiler_params=pltpu.CompilerParams(dimension_semantics=("arbitrary",)),
    )(xp)

    # fold affine params into a single per-feature scale/shift (tiny (1,D) math)
    scale = weight.reshape(1, D).astype(jnp.float32) * inv_std
    shift = bias.reshape(1, D).astype(jnp.float32) - mean * scale

    # phase 2: normalize row tiles ("parallel" -> megacore on v7x)
    out = pl.pallas_call(
        _scale_shift_kernel,
        out_shape=jax.ShapeDtypeStruct((n_pad, D), x.dtype),
        grid=(n_pad // tile,),
        in_specs=[pl.BlockSpec((tile, D), lambda i: (i, 0)),
                  pl.BlockSpec((1, D), lambda i: (0, 0)),
                  pl.BlockSpec((1, D), lambda i: (0, 0))],
        out_specs=pl.BlockSpec((tile, D), lambda i: (i, 0)),
        compiler_params=pltpu.CompilerParams(dimension_semantics=("parallel",)),
    )(xp, scale, shift)
    return out[:N] if n_pad != N else out


# ----------------------------------------------------------------------------
# graphnorm: one padded slot per graph, grid over graphs (parallel axis)
#
# For graph g (n = counts[g] valid rows in its slot):
#   mean_g = sum(valid x) / n
#   sub    = x - mean_g * mean_scale
#   std_g  = sqrt(sum(valid sub^2) / n + 1e-6)
#   out    = sub * (weight / std_g) + bias
# ----------------------------------------------------------------------------
def _graphnorm_kernel(counts_ref, x_ref, ms_ref, w_ref, b_ref, o_ref):
    g = pl.program_id(0)
    n = counts_ref[g]                                        # SMEM scalar
    x = x_ref[0].astype(jnp.float32)                         # (MAX_PAD, D)

    rows = lax.broadcasted_iota(jnp.int32, (x.shape[0], 1), 0)
    valid = rows < n                                         # (MAX_PAD, 1)
    inv_n = 1.0 / jnp.maximum(n, 1).astype(jnp.float32)      # guard empty graph

    x_m = jnp.where(valid, x, 0.0)
    mean = jnp.sum(x_m, axis=0, keepdims=True) * inv_n       # (1, D)
    sub = x - mean * ms_ref[...]
    sub_m = jnp.where(valid, sub, 0.0)
    var = jnp.sum(sub_m * sub_m, axis=0, keepdims=True) * inv_n
    inv_std = lax.rsqrt(var + 1e-6)                          # (1, D), EUP
    o_ref[0] = (sub * (w_ref[...] * inv_std) + b_ref[...]).astype(o_ref.dtype)


def graphnorm_pallas(x, batch_num_nodes, weight, bias, mean_scale):
    N, D = x.shape
    counts_np = np.asarray(batch_num_nodes, dtype=np.int32)
    B = int(counts_np.shape[0])
    offsets = np.concatenate([[0], np.cumsum(counts_np)[:-1]]).astype(np.int32)
    max_pad = max(8, _round_up(int(counts_np.max()), 8))

    # Host-built pack/unpack gather indices: each graph occupies its own
    # (max_pad, D) slot; slot rows >= n_g point at an appended zero row.
    # TODO(synk): a zero-copy ragged version via pl.BoundedSlice index_maps
    #             would avoid these gathers and the retrace on batch changes.
    idx_in = np.full((B, max_pad), N, dtype=np.int32)
    idx_out = np.empty((N,), dtype=np.int32)
    for g in range(B):
        n_g = int(counts_np[g])
        off = int(offsets[g])
        idx_in[g, :n_g] = off + np.arange(n_g, dtype=np.int32)
        idx_out[off:off + n_g] = g * max_pad + np.arange(n_g, dtype=np.int32)

    x_ext = jnp.concatenate([x, jnp.zeros((1, D), x.dtype)], axis=0)
    xp = jnp.take(x_ext, jnp.asarray(idx_in).reshape(-1), axis=0)
    xp = xp.reshape(B, max_pad, D)

    counts = jnp.asarray(counts_np)
    w = weight.reshape(1, D).astype(jnp.float32)
    b = bias.reshape(1, D).astype(jnp.float32)
    ms = mean_scale.reshape(1, D).astype(jnp.float32)

    grid_spec = pltpu.PrefetchScalarGridSpec(
        num_scalar_prefetch=1,  # counts -> SMEM
        grid=(B,),
        in_specs=[
            pl.BlockSpec((1, max_pad, D), lambda g, cnt: (g, 0, 0)),  # x slot
            pl.BlockSpec((1, D), lambda g, cnt: (0, 0)),              # mean_scale
            pl.BlockSpec((1, D), lambda g, cnt: (0, 0)),              # weight
            pl.BlockSpec((1, D), lambda g, cnt: (0, 0)),              # bias
        ],
        out_specs=pl.BlockSpec((1, max_pad, D), lambda g, cnt: (g, 0, 0)),
    )
    yp = pl.pallas_call(
        _graphnorm_kernel,
        out_shape=jax.ShapeDtypeStruct((B, max_pad, D), x.dtype),
        grid_spec=grid_spec,
        compiler_params=pltpu.CompilerParams(dimension_semantics=("parallel",)),
    )(counts, xp, ms, w, b)

    return jnp.take(yp.reshape(B * max_pad, D), jnp.asarray(idx_out), axis=0)


# ----------------------------------------------------------------------------
# NormLayer wrapper mirroring the PyTorch module's dispatch
# ----------------------------------------------------------------------------
class Graph:
    def __init__(self, batch_num_nodes):
        self.batch_num_nodes = list(batch_num_nodes)


class NormLayerPallas:
    def __init__(self, hidden_dim, norm_type):
        self.norm_type = norm_type
        self.hidden_dim = hidden_dim
        if norm_type in ("batchnorm", "layernorm"):
            # nn.BatchNorm1d / nn.LayerNorm default init: weight=1, bias=0
            self.weight = jnp.ones((hidden_dim,), jnp.float32)
            self.bias = jnp.zeros((hidden_dim,), jnp.float32)
        elif norm_type == "graphnorm":
            self.weight = jnp.ones((hidden_dim,), jnp.float32)
            self.bias = jnp.zeros((hidden_dim,), jnp.float32)
            self.mean_scale = jnp.ones((hidden_dim,), jnp.float32)
        else:
            raise NotImplementedError

    def __call__(self, graph, x):
        if self.norm_type == "layernorm":
            return layernorm_pallas(x, self.weight, self.bias)
        if self.norm_type == "batchnorm":
            return batchnorm_pallas(x, self.weight, self.bias)
        return graphnorm_pallas(
            x, graph.batch_num_nodes, self.weight, self.bias, self.mean_scale
        )


# ----------------------------------------------------------------------------
# pure-numpy references (correctness checks)
# ----------------------------------------------------------------------------
def graphnorm_ref(x, batch_num_nodes, weight, bias, mean_scale):
    counts = np.asarray(batch_num_nodes)
    bidx = np.repeat(np.arange(len(counts)), counts)
    x = np.asarray(x, np.float32)
    B, D = len(counts), x.shape[1]
    mean = np.zeros((B, D), np.float32)
    np.add.at(mean, bidx, x)
    mean = mean / counts[:, None]
    sub = x - mean[bidx] * np.asarray(mean_scale)
    std = np.zeros((B, D), np.float32)
    np.add.at(std, bidx, sub ** 2)
    std = np.sqrt(std / counts[:, None] + 1e-6)
    return np.asarray(weight) * sub / std[bidx] + np.asarray(bias)


if __name__ == "__main__":
    key = jax.random.PRNGKey(0)
    hidden_dim = 32
    batch_num_nodes = [3, 5]            # two graphs, 8 nodes total
    N = sum(batch_num_nodes)

    x = jax.random.normal(key, (N, hidden_dim), dtype=jnp.float32)
    graph = Graph(batch_num_nodes)
    xs = np.asarray(x, np.float32)

    # --- graphnorm (the custom hot path) ---
    gn = NormLayerPallas(hidden_dim, "graphnorm")
    out_gn = jax.block_until_ready(gn(graph, x))
    ref_gn = graphnorm_ref(x, batch_num_nodes, gn.weight, gn.bias, gn.mean_scale)
    np.testing.assert_allclose(np.asarray(out_gn), ref_gn, rtol=1e-4, atol=1e-4)

    # --- layernorm ---
    ln = NormLayerPallas(hidden_dim, "layernorm")
    out_ln = jax.block_until_ready(ln(graph, x))
    mu = xs.mean(-1, keepdims=True)
    var = ((xs - mu) ** 2).mean(-1, keepdims=True)
    ref_ln = (xs - mu) / np.sqrt(var + 1e-5)
    np.testing.assert_allclose(np.asarray(out_ln), ref_ln, rtol=1e-4, atol=1e-4)

    # --- batchnorm (training-mode batch statistics) ---
    bn = NormLayerPallas(hidden_dim, "batchnorm")
    out_bn = jax.block_until_ready(bn(graph, x))
    mu = xs.mean(0, keepdims=True)
    var = ((xs - mu) ** 2).mean(0, keepdims=True)
    ref_bn = (xs - mu) / np.sqrt(var + 1e-5)
    np.testing.assert_allclose(np.asarray(out_bn), ref_bn, rtol=1e-4, atol=1e-4)

    print("KERNEL_OK")
</pallas_src>

<mosaic_0001>
module attributes {stable_mosaic.version = 11 : i64} {
  func.func @_graphnorm_kernel(%arg0: i32, %arg1: memref<2xi32, #tpu.memory_space<smem>>, %arg2: memref<1x8x32xf32, #tpu.memory_space<vmem>>, %arg3: memref<1x32xf32, #tpu.memory_space<vmem>>, %arg4: memref<1x32xf32, #tpu.memory_space<vmem>>, %arg5: memref<1x32xf32, #tpu.memory_space<vmem>>, %arg6: memref<1x8x32xf32, #tpu.memory_space<vmem>>) attributes {dimension_semantics = [#tpu.dimension_semantics<parallel>], iteration_bounds = array<i64: 2>, scalar_prefetch = 1 : i64, scratch_operands = 0 : i64, tpu.core_type = #tpu.core_type<tc>, window_params = [{transform_indices = @transform_0, window_bounds = array<i64: 1, 8, 32>}, {pipeline_mode = #tpu.pipeline_mode<synchronous>, transform_indices = @transform_1, window_bounds = array<i64: 1, 32>}, {pipeline_mode = #tpu.pipeline_mode<synchronous>, transform_indices = @transform_2, window_bounds = array<i64: 1, 32>}, {pipeline_mode = #tpu.pipeline_mode<synchronous>, transform_indices = @transform_3, window_bounds = array<i64: 1, 32>}, {transform_indices = @transform_4, window_bounds = array<i64: 1, 8, 32>}]} {
    %0 = arith.index_cast %arg0 : i32 to index
    %1 = memref.load %arg1[%0] : memref<2xi32, #tpu.memory_space<smem>>
    %c0 = arith.constant 0 : index
    %c0_0 = arith.constant 0 : index
    %c0_1 = arith.constant 0 : index
    %2 = vector.load %arg2[%c0, %c0_0, %c0_1] : memref<1x8x32xf32, #tpu.memory_space<vmem>>, vector<1x8x32xf32>
    %3 = vector.shape_cast %2 : vector<1x8x32xf32> to vector<8x32xf32>
    %4 = tpu.iota {dimensions = array<i32: 0>} : vector<8x1xi32>
    %5 = vector.broadcast %1 : i32 to vector<8x1xi32>
    %6 = arith.cmpi slt, %4, %5 : vector<8x1xi32>
    %c1_i32 = arith.constant 1 : i32
    %7 = arith.maxsi %1, %c1_i32 : i32
    %8 = arith.sitofp %7 : i32 to f32
    %cst = arith.constant 1.000000e+00 : f32
    %9 = arith.divf %cst, %8 : f32
    %cst_2 = arith.constant 0.000000e+00 : f32
    %10 = vector.shape_cast %6 : vector<8x1xi1> to vector<8x1xi1>
    %11 = vector.broadcast %10 : vector<8x1xi1> to vector<8x32xi1>
    %12 = vector.broadcast %cst_2 : f32 to vector<8x32xf32>
    %13 = arith.select %11, %3, %12 : vector<8x32xi1>, vector<8x32xf32>
    %cst_3 = arith.constant dense<0.000000e+00> : vector<32xf32>
    %14 = vector.multi_reduction <add>, %13, %cst_3 [0] : vector<8x32xf32> to vector<32xf32>
    %15 = vector.shape_cast %14 : vector<32xf32> to vector<1x32xf32>
    %16 = vector.broadcast %9 : f32 to vector<1x32xf32>
    %17 = arith.mulf %15, %16 : vector<1x32xf32>
    %c0_4 = arith.constant 0 : index
    %c0_5 = arith.constant 0 : index
    %18 = vector.load %arg3[%c0_4, %c0_5] : memref<1x32xf32, #tpu.memory_space<vmem>>, vector<1x32xf32>
    %19 = arith.mulf %17, %18 : vector<1x32xf32>
    %20 = vector.broadcast %19 : vector<1x32xf32> to vector<8x32xf32>
    %21 = arith.subf %3, %20 : vector<8x32xf32>
    %cst_6 = arith.constant 0.000000e+00 : f32
    %22 = vector.shape_cast %6 : vector<8x1xi1> to vector<8x1xi1>
    %23 = vector.broadcast %22 : vector<8x1xi1> to vector<8x32xi1>
    %24 = vector.broadcast %cst_6 : f32 to vector<8x32xf32>
    %25 = arith.select %23, %21, %24 : vector<8x32xi1>, vector<8x32xf32>
    %26 = arith.mulf %25, %25 : vector<8x32xf32>
    %cst_7 = arith.constant dense<0.000000e+00> : vector<32xf32>
    %27 = vector.multi_reduction <add>, %26, %cst_7 [0] : vector<8x32xf32> to vector<32xf32>
    %28 = vector.shape_cast %27 : vector<32xf32> to vector<1x32xf32>
    %29 = vector.broadcast %9 : f32 to vector<1x32xf32>
    %30 = arith.mulf %28, %29 : vector<1x32xf32>
    %cst_8 = arith.constant 9.99999997E-7 : f32
    %31 = vector.broadcast %cst_8 : f32 to vector<1x32xf32>
    %32 = arith.addf %30, %31 : vector<1x32xf32>
    %33 = math.rsqrt %32 : vector<1x32xf32>
    %c0_9 = arith.constant 0 : index
    %c0_10 = arith.constant 0 : index
    %34 = vector.load %arg4[%c0_9, %c0_10] : memref<1x32xf32, #tpu.memory_space<vmem>>, vector<1x32xf32>
    %35 = arith.mulf %34, %33 : vector<1x32xf32>
    %36 = vector.broadcast %35 : vector<1x32xf32> to vector<8x32xf32>
    %37 = arith.mulf %21, %36 : vector<8x32xf32>
    %c0_11 = arith.constant 0 : index
    %c0_12 = arith.constant 0 : index
    %38 = vector.load %arg5[%c0_11, %c0_12] : memref<1x32xf32, #tpu.memory_space<vmem>>, vector<1x32xf32>
    %39 = vector.broadcast %38 : vector<1x32xf32> to vector<8x32xf32>
    %40 = arith.addf %37, %39 : vector<8x32xf32>
    %c0_13 = arith.constant 0 : index
    %c0_14 = arith.constant 0 : index
    %c0_15 = arith.constant 0 : index
    %41 = vector.load %arg6[%c0_13, %c0_14, %c0_15] : memref<1x8x32xf32, #tpu.memory_space<vmem>>, vector<1x8x32xf32>
    %42 = vector.shape_cast %41 : vector<1x8x32xf32> to vector<8x32xf32>
    %43 = vector.shape_cast %40 : vector<8x32xf32> to vector<1x8x32xf32>
    tpu.vector_store %arg6[%c0_13, %c0_14, %c0_15], %43 {strides = array<i32>} : memref<1x8x32xf32, #tpu.memory_space<vmem>>, vector<1x8x32xf32>,
    return
  }
  func.func @transform_0(%arg0: i32, %arg1: memref<2xi32, #tpu.memory_space<smem>>) -> (i32, i32, i32) {
    %c0_i32 = arith.constant 0 : i32
    %c0_i32_0 = arith.constant 0 : i32
    %c0_i32_1 = arith.constant 0 : i32
    return %arg0, %c0_i32, %c0_i32_0 : i32, i32, i32
  }
  func.func @transform_1(%arg0: i32, %arg1: memref<2xi32, #tpu.memory_space<smem>>) -> (i32, i32) {
    %c0_i32 = arith.constant 0 : i32
    %c0_i32_0 = arith.constant 0 : i32
    %c0_i32_1 = arith.constant 0 : i32
    return %c0_i32, %c0_i32_0 : i32, i32
  }
  func.func @transform_2(%arg0: i32, %arg1: memref<2xi32, #tpu.memory_space<smem>>) -> (i32, i32) {
    %c0_i32 = arith.constant 0 : i32
    %c0_i32_0 = arith.constant 0 : i32
    %c0_i32_1 = arith.constant 0 : i32
    return %c0_i32, %c0_i32_0 : i32, i32
  }
  func.func @transform_3(%arg0: i32, %arg1: memref<2xi32, #tpu.memory_space<smem>>) -> (i32, i32) {
    %c0_i32 = arith.constant 0 : i32
    %c0_i32_0 = arith.constant 0 : i32
    %c0_i32_1 = arith.constant 0 : i32
    return %c0_i32, %c0_i32_0 : i32, i32
  }
  func.func @transform_4(%arg0: i32, %arg1: memref<2xi32, #tpu.memory_space<smem>>) -> (i32, i32, i32) {
    %c0_i32 = arith.constant 0 : i32
    %c0_i32_0 = arith.constant 0 : i32
    %c0_i32_1 = arith.constant 0 : i32
    return %arg0, %c0_i32, %c0_i32_0 : i32, i32, i32
  }
}

</mosaic_0001>

<llo_original>
// kernel: tpu_custom_call.1
$region0: #{tpu_custom_call.1}
  #allocation0 [shape = 'u32[]', space=smem, size = 0x4, offset = 0x4, fixed_abs, tag = 'smem constant byte address 0x4 - core index']
  #allocation1 [shape = 'u32[144,128]{1,0:T(1,128)}', space=vmem, size = 0x12000, scoped, tag = 'internal scratch']
  #allocation2 [shape = 's32[1]{0}', space=sflag, size = 0x4, scoped, tag = 'scoped memory for tpu_custom_call.1']
  #allocation3 [shape = 'u8[512]{0}', space=smem, size = 0x200, scoped, tag = 'prefetched SMEM operand 0']
  %s0 = inlined_call_operand.hbm [shape: s32[2], index: 0, kind: input, shape index: {}]
  %s1 = inlined_call_operand.hbm [shape: f32[2,8,32], index: 1, kind: input, shape index: {}]
  %s2 = inlined_call_operand.vmem [shape: f32[1,32], index: 2, kind: input, shape index: {}]
  %s3 = inlined_call_operand.vmem [shape: f32[1,32], index: 3, kind: input, shape index: {}]
  %s4 = inlined_call_operand.vmem [shape: f32[1,32], index: 4, kind: input, shape index: {}]
  %s5 = inlined_call_operand.hbm [shape: f32[2,8,32], index: 5, kind: output, shape index: {}]
  %s6 = sld [smem:[#allocation0]]
  $region53: #{tpu_custom_call.1} parent=0
    _
  %s8 = ssub.s32 1, %s6
  %s9 = scalar_select 0, %s8, %s6
  %11 = dma.hbm_to_smem %s0, 16, [#allocation3], [#allocation2]
  %12 = dma.done [#allocation2], 16
  %13 = sfence
  $region1: #{tpu_custom_call.1} parent=0
    #allocation4 [shape = 'u8[8192]{0}', space=vmem, size = 0x2000, scoped, tag = 'input window, operand 1']
    #allocation5 [shape = 's32[2]{0}', space=sflag, size = 0x8, scoped, tag = 'scoped memory for tpu_custom_call.1']
    #allocation6 [shape = 's32[2]{0}', space=sflag, size = 0x8, scoped, tag = 'scoped memory for tpu_custom_call.1']
    #allocation7 [shape = 'u8[8192]{0}', space=vmem, size = 0x2000, scoped, tag = 'output window, operand 0']
    %14 = vsyncpa [#allocation5], 0
    %s15 = scalar_lea.sflag [#allocation5], 1
    %16 = vsyncpa %s15, 0
    %17 = vsyncpa [#allocation6], 0
    %s18 = scalar_lea.sflag [#allocation6], 1
    %19 = vsyncpa %s18, 0
    loop: start=0, step=1, limit=4
    $region2: #{tpu_custom_call.1} parent=1 // loop_pre_header
      _
    $region3: #{tpu_custom_call.1} parent=1 // loop_header
      %s21 = sphi 0, %s25
      %p22 = scmp.ge.s32.totalorder %s21, 4
      %s31 = sphi 0, %s33
      %s34 = sphi 0, %s31
      %s35 = sphi 0, %s34
      %s51 = sphi 0, %s35
      %s55 = sphi 0, %s55
      %s57 = sphi 0, %s55
      %s58 = sphi 0, %s57
      %s72 = sphi 0, %s58
      %s76 = sphi 0, %s76
      %s78 = sphi 0, %s76
      %s79 = sphi 0, %s78
      %s93 = sphi 0, %s79
      %s97 = sphi 0, %s97
      %s99 = sphi 0, %s97
      %s100 = sphi 0, %s99
      %s114 = sphi 0, %s100
      %s120 = sphi 0, %s122
      %s123 = sphi 0, %s120
      %s124 = sphi 0, %s123
      %s140 = sphi 0, %s124
    $region4: #{tpu_custom_call.1} parent=1 // loop_header_branch
      %24 = sbr.rel (%p22) target = $region8
    $region5: #{tpu_custom_call.1} parent=1 // loop_body
      %s26 = ssub.s32 %s21, 1
      %s27 = ssub.s32 %s21, 2
      %s28 = sadd.s32 %s21, 1
      %s29 = ssub.s32 %s21, %s28
      %p30 = scmp.eq.s32.totalorder %s29, 0
      %s32 = sadd.s32 %s31, 1
      %s33 = scalar_select %p30, %s31, %s32
      %p36 = pneg %p30
      %p37 = scmp.eq.s32.totalorder %s21, 1
      %p38 = por %p36, %p37
      %p39 = scmp.ne.s32.totalorder %s31, %s34
      %p40 = scmp.eq.s32.totalorder %s21, 0
      %p41 = por %p39, %p40
      %p42 = scmp.ne.s32.totalorder %s31, %s34
      %p43 = scmp.eq.s32.totalorder %s26, 1
      %p44 = por %p42, %p43
      %p45 = scmp.ne.s32.totalorder %s34, %s35
      %p46 = scmp.eq.s32.totalorder %s26, 0
      %p47 = por %p45, %p46
      %p48 = scmp.ne.s32.totalorder %s34, %s35
      %p49 = scmp.eq.s32.totalorder %s27, 1
      %p50 = por %p48, %p49
      %p52 = scmp.ne.s32.totalorder %s35, %s51
      %p53 = scmp.eq.s32.totalorder %s27, 0
      %p54 = por %p52, %p53
      %s56 = sadd.s32 %s55, 1
      %p59 = scmp.eq.s32.totalorder %s21, 1
      %p60 = scmp.ne.s32.totalorder %s55, %s57
      %p61 = scmp.eq.s32.totalorder %s21, 0
      %p62 = por %p60, %p61
      %p63 = scmp.ne.s32.totalorder %s55, %s57
      %p64 = scmp.eq.s32.totalorder %s26, 1
      %p65 = por %p63, %p64
      %p66 = scmp.ne.s32.totalorder %s57, %s58
      %p67 = scmp.eq.s32.totalorder %s26, 0
      %p68 = por %p66, %p67
      %p69 = scmp.ne.s32.totalorder %s57, %s58
      %p70 = scmp.eq.s32.totalorder %s27, 1
      %p71 = por %p69, %p70
      %p73 = scmp.ne.s32.totalorder %s58, %s72
      %p74 = scmp.eq.s32.totalorder %s27, 0
      %p75 = por %p73, %p74
      %s77 = sadd.s32 %s76, 1
      %p80 = scmp.eq.s32.totalorder %s21, 1
      %p81 = scmp.ne.s32.totalorder %s76, %s78
      %p82 = scmp.eq.s32.totalorder %s21, 0
      %p83 = por %p81, %p82
      %p84 = scmp.ne.s32.totalorder %s76, %s78
      %p85 = scmp.eq.s32.totalorder %s26, 1
      %p86 = por %p84, %p85
      %p87 = scmp.ne.s32.totalorder %s78, %s79
      %p88 = scmp.eq.s32.totalorder %s26, 0
      %p89 = por %p87, %p88
      %p90 = scmp.ne.s32.totalorder %s78, %s79
      %p91 = scmp.eq.s32.totalorder %s27, 1
      %p92 = por %p90, %p91
      %p94 = scmp.ne.s32.totalorder %s79, %s93
      %p95 = scmp.eq.s32.totalorder %s27, 0
      %p96 = por %p94, %p95
      %s98 = sadd.s32 %s97, 1
      %p101 = scmp.eq.s32.totalorder %s21, 1
      %p102 = scmp.ne.s32.totalorder %s97, %s99
      %p103 = scmp.eq.s32.totalorder %s21, 0
      %p104 = por %p102, %p103
      %p105 = scmp.ne.s32.totalorder %s97, %s99
      %p106 = scmp.eq.s32.totalorder %s26, 1
      %p107 = por %p105, %p106
      %p108 = scmp.ne.s32.totalorder %s99, %s100
      %p109 = scmp.eq.s32.totalorder %s26, 0
      %p110 = por %p108, %p109
      %p111 = scmp.ne.s32.totalorder %s99, %s100
      %p112 = scmp.eq.s32.totalorder %s27, 1
      %p113 = por %p111, %p112
      %p115 = scmp.ne.s32.totalorder %s100, %s114
      %p116 = scmp.eq.s32.totalorder %s27, 0
      %p117 = por %p115, %p116
      %s118 = ssub.s32 %s21, %s28
      %p119 = scmp.eq.s32.totalorder %s118, 0
      %s121 = sadd.s32 %s120, 1
      %s122 = scalar_select %p119, %s120, %s121
      %p125 = pneg %p119
      %p126 = scmp.eq.s32.totalorder %s21, 1
      %p127 = por %p125, %p126
      %p128 = scmp.ne.s32.totalorder %s120, %s123
      %p129 = scmp.eq.s32.totalorder %s21, 0
      %p130 = por %p128, %p129
      %p131 = scmp.ne.s32.totalorder %s120, %s123
      %p132 = scmp.eq.s32.totalorder %s26, 1
      %p133 = por %p131, %p132
      %p134 = scmp.ne.s32.totalorder %s123, %s124
      %p135 = scmp.eq.s32.totalorder %s26, 0
      %p136 = por %p134, %p135
      %p137 = scmp.ne.s32.totalorder %s123, %s124
      %p138 = scmp.eq.s32.totalorder %s27, 1
      %p139 = por %p137, %p138
      %p141 = scmp.ne.s32.totalorder %s124, %s140
      %p142 = scmp.eq.s32.totalorder %s27, 0
      %p143 = por %p141, %p142
      %p144 = scmp.le.s32.totalorder 1, %s21
      %p145 = scmp.lt.s32.totalorder %s21, 3
      %p146 = pnand %p144, %p145
      %p147 = pneg %p146
      // Predicated region
      $region9: #{tpu_custom_call.1} parent=5 // pred_check
        _
      $region10: #{tpu_custom_call.1} parent=5 // pred_check_branch
        %149 = sbr.rel (%p146) target = $region12
      $region11: #{tpu_custom_call.1} parent=5 // pred_region
        %s150 = ssub.s32 %s21, 1
        // Predicated region
        $region13: #{tpu_custom_call.1} parent=11 // pred_check
          %p151 = pneg %p68
        $region14: #{tpu_custom_call.1} parent=11 // pred_check_branch
          %153 = sbr.rel (%p151) target = $region16
        $region15: #{tpu_custom_call.1} parent=11 // pred_region
          _
        $region16: #{tpu_custom_call.1} parent=11 // pred_fallthru
          _
        // Predicated region
        $region17: #{tpu_custom_call.1} parent=11 // pred_check
          %p154 = pneg %p89
        $region18: #{tpu_custom_call.1} parent=11 // pred_check_branch
          %156 = sbr.rel (%p154) target = $region20
        $region19: #{tpu_custom_call.1} parent=11 // pred_region
          _
        $region20: #{tpu_custom_call.1} parent=11 // pred_fallthru
          _
        // Predicated region
        $region21: #{tpu_custom_call.1} parent=11 // pred_check
          %p157 = pneg %p110
        $region22: #{tpu_custom_call.1} parent=11 // pred_check_branch
          %159 = sbr.rel (%p157) target = $region24
        $region23: #{tpu_custom_call.1} parent=11 // pred_region
          _
        $region24: #{tpu_custom_call.1} parent=11 // pred_fallthru
          _
      $region12: #{tpu_custom_call.1} parent=5 // pred_fallthru
        _
      %p160 = scmp.lt.s32.totalorder %s21, 2
      // Predicated region
      $region25: #{tpu_custom_call.1} parent=5 // pred_check
        %p161 = pneg %p160
      $region26: #{tpu_custom_call.1} parent=5 // pred_check_branch
        %163 = sbr.rel (%p161) target = $region28
      $region27: #{tpu_custom_call.1} parent=5 // pred_region
        // Predicated region
        $region29: #{tpu_custom_call.1} parent=27 // pred_check
          %p164 = pneg %p41
        $region30: #{tpu_custom_call.1} parent=27 // pred_check_branch
          %166 = sbr.rel (%p164) target = $region32
        $region31: #{tpu_custom_call.1} parent=27 // pred_region
          %s167 = sand.u32 %s31, 1
          %s168 = scalar_lea.sflag [#allocation5], %s167
          %s169 = sand.u32 %s31, 1
          %s170 = smul.addr %s169, 8
          %s171 = scalar_lea.vmem [#allocation4], %s170
          %s173 = ssub.s32 128, 128
          %174 = vsyncadd %s168, %s173
          %s175 = smul.addr %s21, 128
          %s176 = scalar_lea.hbm %s1, %s175
          %s178 = sshll.u32 %s171, 4
          %s179 = int_to_ptr.vmem [resolvable:$true] %s178
          %181 = dma.hbm_to_vmem [thread:$0]  %s176, 128, %s179, %s168
        $region32: #{tpu_custom_call.1} parent=27 // pred_fallthru
          _
      $region28: #{tpu_custom_call.1} parent=5 // pred_fallthru
        _
      %p182 = scmp.le.s32.totalorder 1, %s21
      %p183 = scmp.lt.s32.totalorder %s21, 3
      %p184 = pnand %p182, %p183
      %p185 = pneg %p184
      // Predicated region
      $region33: #{tpu_custom_call.1} parent=5 // pred_check
        _
      $region34: #{tpu_custom_call.1} parent=5 // pred_check_branch
        %187 = sbr.rel (%p184) target = $region36
      $region35: #{tpu_custom_call.1} parent=5 // pred_region
        %s188 = ssub.s32 %s21, 1
        %s189 = sand.u32 %s34, 1
        %s190 = scalar_lea.sflag [#allocation5], %s189
        %s191 = sand.u32 %s34, 1
        %s192 = smul.addr %s191, 8
        %s193 = scalar_lea.vmem [#allocation4], %s192
        // Predicated region
        $region37: #{tpu_custom_call.1} parent=35 // pred_check
          %p194 = pneg %p47
        $region38: #{tpu_custom_call.1} parent=35 // pred_check_branch
          %196 = sbr.rel (%p194) target = $region40
        $region39: #{tpu_custom_call.1} parent=35 // pred_region
          %197 = dma.done %s190, 128
        $region40: #{tpu_custom_call.1} parent=35 // pred_fallthru
          _
        %s198 = sand.u32 %s34, 1
        %s199 = scalar_lea.sflag [#allocation5], %s198
        %s200 = sand.u32 %s34, 1
        %s201 = smul.addr %s200, 8
        %s202 = scalar_lea.vmem [#allocation4], %s201
        %p203 = pneg %p47
        %p204 = pneg %p44
        %p205 = pneg %p68
        %p206 = pneg %p65
        %p207 = pneg %p89
        %p208 = pneg %p86
        %p209 = pneg %p110
        %p210 = pneg %p107
        %p211 = pneg %p136
        %p212 = pneg %p133
        %s213 = sand.u32 %s123, 1
        %s214 = scalar_lea.sflag [#allocation6], %s213
        %s215 = sand.u32 %s123, 1
        %s216 = smul.addr %s215, 8
        %s217 = scalar_lea.vmem [#allocation7], %s216
        %s218 = sld [smem:[#allocation3 + %s26]]
        %v219 = vld [vmem:[%s193] sm:$0xff]
        %v220 = vlaneseq
        %v221 = vshrl.u32 %v220, 7
        %v222 = vstv %s218
        %vm223 = vcmp.lt.s32.totalorder %v221, %v222
        %p224 = scmp.gt.s32.totalorder %s218, 1
        %s225 = scalar_select %p224, %s218, 1
        %s226 = scvt.s32.f32 %s225
        %v227 = vstv %s226
        %v228 = vrcp.pop %v227
        %s229 = vtos %v228
        %v230 = vsel %vm223, 1, 0
        %vm231 = vcmp.eq.s32.totalorder %v230, 1
        %v232 = vsel %vm231, %v219, 0.0
        %vm233 = vcmask 261120
        %v234 = vsel %vm233, %v232, 0.0
        %v235 = vrot.slane %v234, 4
        %v236 = vadd.f32 %v234, %v235
        %v237 = vrot.slane %v236, 2
        %v238 = vadd.f32 %v236, %v237
        %v239 = vrot.slane %v238, 1
        %v240 = vadd.f32 %v238, %v239
        %v241 = vstv %s229
        %v242 = vmul.f32 %v240, %v241
        %v243 = vld [vmem:[%s2] sm:$0x1]
        %v244 = vmul.f32 %v242, %v243
        %v245 = vlaneseq
        %v246 = vshrl.u32 %v245, 7
        %v247 = vsub.s32 0, %v246
        %v248 = vrot.slane %v244, %v247
        %v249 = vsub.f32 %v219, %v248
        %v250 = vsel %vm231, %v249, 0.0
        %v251 = vmul.f32 %v250, %v250
        %v252 = vsel %vm233, %v251, 0.0
        %v253 = vrot.slane %v252, 4
        %v254 = vadd.f32 %v252, %v253
        %v255 = vrot.slane %v254, 2
        %v256 = vadd.f32 %v254, %v255
        %v257 = vrot.slane %v256, 1
        %v258 = vadd.f32 %v256, %v257
        %v259 = vmul.f32 %v258, %v241
        %v260 = vadd.f32 %v259, 1e-06
        %v261 = vrsqrt.pop %v260
        %v262 = vld [vmem:[%s3] sm:$0x1]
        %v263 = vmul.f32 %v262, %v261
        %v265 = vlaneseq
        %v266 = vshrl.u32 %v265, 7
        %v267 = vsub.s32 0, %v266
        %v268 = vrot.slane %v263, %v267
        %v270 = vmul.f32 %v249, %v268
        %v271 = vld [vmem:[%s4] sm:$0x1]
        %v273 = vlaneseq
        %v274 = vshrl.u32 %v273, 7
        %v275 = vsub.s32 0, %v274
        %v276 = vrot.slane %v271, %v275
        %v278 = vadd.f32 %v270, %v276
        %279 = vst.msk [vmem:[%s217] sm:$0xff] %vm233, %v278
        %s280 = sand.u32 %s123, 1
        %s281 = scalar_lea.sflag [#allocation6], %s280
        %s282 = sand.u32 %s123, 1
        %s283 = smul.addr %s282, 8
        %s284 = scalar_lea.vmem [#allocation7], %s283
        // Predicated region
        $region41: #{tpu_custom_call.1} parent=35 // pred_check
          %p285 = pneg %p133
        $region42: #{tpu_custom_call.1} parent=35 // pred_check_branch
          %287 = sbr.rel (%p285) target = $region44
        $region43: #{tpu_custom_call.1} parent=35 // pred_region
          %s289 = ssub.s32 128, 128
          %290 = vsyncadd %s281, %s289
          %s291 = smul.addr %s26, 128
          %s292 = scalar_lea.hbm %s5, %s291
          %s294 = sshll.u32 %s284, 4
          %s295 = int_to_ptr.vmem [resolvable:$true] %s294
          %297 = dma.vmem_to_hbm [thread:$0]  %s295, 128, %s292, %s281
        $region44: #{tpu_custom_call.1} parent=35 // pred_fallthru
          _
      $region36: #{tpu_custom_call.1} parent=5 // pred_fallthru
        _
      %p298 = scmp.le.s32.totalorder 2, %s21
      // Predicated region
      $region45: #{tpu_custom_call.1} parent=5 // pred_check
        %p299 = pneg %p298
      $region46: #{tpu_custom_call.1} parent=5 // pred_check_branch
        %301 = sbr.rel (%p299) target = $region48
      $region47: #{tpu_custom_call.1} parent=5 // pred_region
        %s302 = ssub.s32 %s21, 2
        // Predicated region
        $region49: #{tpu_custom_call.1} parent=47 // pred_check
          %p303 = pneg %p139
        $region50: #{tpu_custom_call.1} parent=47 // pred_check_branch
          %305 = sbr.rel (%p303) target = $region52
        $region51: #{tpu_custom_call.1} parent=47 // pred_region
          %s306 = sand.u32 %s124, 1
          %s307 = scalar_lea.sflag [#allocation6], %s306
          %s308 = sand.u32 %s124, 1
          %s309 = smul.addr %s308, 8
          %s310 = scalar_lea.vmem [#allocation7], %s309
          %311 = dma.done %s307, 128
        $region52: #{tpu_custom_call.1} parent=47 // pred_fallthru
          _
      $region48: #{tpu_custom_call.1} parent=5 // pred_fallthru
        _
    $region6: #{tpu_custom_call.1} parent=1 // loop_footer
      %s25 = sadd.s32 1, %s21
    $region7: #{tpu_custom_call.1} parent=1 // loop_footer_branch
      %20 = sbr.rel target = $region3
    $region8: #{tpu_custom_call.1} parent=1 // loop_exit
      _
    %312 = vsyncpa [#allocation5], 1
    %s313 = scalar_lea.sflag [#allocation5], 1
    %314 = vsyncpa %s313, 1
    %315 = vsyncpa [#allocation6], 1
    %s316 = scalar_lea.sflag [#allocation6], 1
    %317 = vsyncpa %s316, 1

</llo_original>
